<compile_context>
chip_gen: v7x
topology: tpu7x:2x2x1
jax: 0.10.0
libtpu: 0.0.40
codegen_flags: <defaults>
</compile_context>

<pallas_src>
import functools

import jax
import jax.numpy as jnp
from jax.experimental import pallas as pl
from jax.experimental.pallas import tpu as pltpu

_MIB = 1024 * 1024


# ----------------------------------------------------------------------------- helpers
def _cdiv(a, b):
    return -(-a // b)


def _largest_divisor(total, cap):
    """Largest divisor of `total` that is <= cap (>= 1)."""
    cap = int(max(1, min(total, cap)))
    for d in range(cap, 0, -1):
        if total % d == 0:
            return d
    return 1


def _device_params():
    """(vmem_capacity_bytes, num_tensorcores) with safe fallbacks."""
    vmem_cap = 64 * _MIB        # conservative default (v7x-sized) if query fails
    num_cores = 1
    try:
        info = pltpu.get_tpu_info()
        vmem_cap = int(getattr(info, "vmem_capacity_bytes", vmem_cap))
        for name in ("num_cores", "core_count", "num_tensorcores", "tensorcore_count"):
            v = getattr(info, name, None)
            if v:
                num_cores = int(v)
                break
    except Exception:
        pass
    return vmem_cap, max(1, num_cores)


def _vmem_limit(vmem_cap, block_bytes):
    """VMEM budget: double-buffered input tile + outputs/weights, capped by physical VMEM."""
    want = max(32 * _MIB, 3 * block_bytes + 4 * _MIB)
    return int(min(vmem_cap * 3 // 4, want))


# ----------------------------------------------------------------------------- kernels
def _fused_kernel(x_ref, w1t_ref, w2t_ref, o_ref, *, inv_hw):
    """Fused avg/max pool + shared MLP + sigmoid for one batch tile.

    x_ref:   (b_tile, C, HW)  input tile (original dtype)
    w1t_ref: (C, Cr)          fc1 weight transposed (resident, constant index map)
    w2t_ref: (Cr, C)          fc2 weight transposed (resident)
    o_ref:   (b_tile, 1, C)   attention weights (input dtype)
    """
    x = x_ref[...]                                               # stay in input dtype
    mean = jnp.sum(x, axis=-1, dtype=jnp.float32) * inv_hw       # (b_tile, C), f32 accumulate
    mx = jnp.max(x, axis=-1).astype(jnp.float32)                 # (b_tile, C), exact max

    w1t = w1t_ref[...].astype(jnp.float32)
    w2t = w2t_ref[...].astype(jnp.float32)

    stats = jnp.concatenate([mean, mx], axis=0)                  # (2*b_tile, C): one matmul pair
    hid = jnp.maximum(jnp.dot(stats, w1t, preferred_element_type=jnp.float32), 0.0)
    y = jnp.dot(hid, w2t, preferred_element_type=jnp.float32)
    b = mean.shape[0]
    attn = jax.nn.sigmoid(y[:b] + y[b:])                         # (b_tile, C)
    o_ref[...] = attn[:, None, :].astype(o_ref.dtype)


def _pool_kernel(x_ref, mean_ref, max_ref, sum_sc, max_sc, *,
                 inv_hw, hw_total, hw_tile, need_mask, multi_step):
    """Channel-tiled avg/max pooling (optionally spatially tiled with a masked tail).

    x_ref:    (1, c_tile, hw_tile)   input tile (contiguous HBM slab when hw_tile == HW)
    mean_ref: (1, 1, 1, c_tile) f32  per-channel mean
    max_ref:  (1, 1, 1, c_tile) f32  per-channel max
    sum_sc / max_sc: (1, c_tile) f32 scratch accumulators (used only when multi_step)
    """
    x = x_ref[...]
    if need_mask:
        pos = jax.lax.broadcasted_iota(jnp.int32, x.shape, 2) + pl.program_id(2) * hw_tile
        valid = pos < hw_total
        x_sum = jnp.where(valid, x, jnp.array(0, dtype=x.dtype))
        x_max = jnp.where(valid, x, jnp.array(-jnp.inf, dtype=x.dtype))
    else:
        x_sum = x
        x_max = x

    psum = jnp.sum(x_sum, axis=-1, dtype=jnp.float32)            # (1, c_tile)
    pmax = jnp.max(x_max, axis=-1).astype(jnp.float32)           # (1, c_tile)

    if not multi_step:
        # Single spatial step: write results directly, no accumulator / pl.when needed.
        mean_ref[...] = (psum * inv_hw).reshape(mean_ref.shape)
        max_ref[...] = pmax.reshape(max_ref.shape)
    else:
        h = pl.program_id(2)

        @pl.when(h == 0)
        def _init():
            sum_sc[...] = jnp.zeros_like(sum_sc)
            max_sc[...] = jnp.full_like(max_sc, -jnp.inf)

        sum_sc[...] += psum
        max_sc[...] = jnp.maximum(max_sc[...], pmax)

        @pl.when(h == pl.num_programs(2) - 1)
        def _fin():
            mean_ref[...] = (sum_sc[...] * inv_hw).reshape(mean_ref.shape)
            max_ref[...] = max_sc[...].reshape(max_ref.shape)


def _mlp_kernel(mean_ref, max_ref, w1t_ref, w2t_ref, o_ref):
    """One-shot shared MLP + sigmoid on pooled stats for the whole batch (split path)."""
    mean = mean_ref[...].astype(jnp.float32)                     # (N, C)
    mx = max_ref[...].astype(jnp.float32)                        # (N, C)
    w1t = w1t_ref[...].astype(jnp.float32)                       # (C, Cr)
    w2t = w2t_ref[...].astype(jnp.float32)                       # (Cr, C)

    stats = jnp.concatenate([mean, mx], axis=0)                  # (2N, C)
    hid = jnp.maximum(jnp.dot(stats, w1t, preferred_element_type=jnp.float32), 0.0)
    y = jnp.dot(hid, w2t, preferred_element_type=jnp.float32)
    n = mean.shape[0]
    o_ref[...] = jax.nn.sigmoid(y[:n] + y[n:]).astype(o_ref.dtype)


# ----------------------------------------------------------------------------- wrapper
def channel_attention(x_nchw, w1, w2, *, target_block_bytes=None):
    """x_nchw: (N, C, H, W); w1: (Cr, C) = fc1.weight[:,:,0,0]; w2: (C, Cr). -> (N, C, 1, 1)."""
    N, C, H, W = x_nchw.shape
    Cr = w1.shape[0]
    HW = H * W

    # Free reshape of contiguous NCHW -> (N, C, HW): x streamed from HBM exactly once.
    x = x_nchw.reshape(N, C, HW)
    itemsize = jnp.dtype(x.dtype).itemsize
    per_batch = C * HW * itemsize
    sublane = max(8, 32 // itemsize)                             # 8 f32 / 16 bf16 / 32 int8-fp8

    vmem_cap, num_cores = _device_params()
    if target_block_bytes is None:
        # ~8 MiB tiles on v7x (64 MiB VMEM, 3.2 TB/s), ~16 MiB on v5e/v6e (128 MiB VMEM).
        target_block_bytes = max(4 * _MIB, min(16 * _MIB, vmem_cap // 8))
    target_block_bytes = int(target_block_bytes)

    w1t = w1.T                                                   # (C, Cr)
    w2t = w2.T                                                   # (Cr, C)
    inv_hw = 1.0 / HW
    out_dtype = x_nchw.dtype

    # Split per-batch work over channels when (a) the slab exceeds the streaming budget,
    # or (b) the chip has >1 TensorCore and too few batch elements to feed them all.
    can_ctile = (C % sublane == 0) and (C >= 2 * sublane)
    want_core_split = (num_cores >= 2 and N < num_cores and can_ctile
                       and N * per_batch >= 2 * _MIB)
    use_fused = (per_batch <= target_block_bytes) and not want_core_split

    if use_fused:
        # -------- fused path: single kernel, grid over batch tiles only --------
        cap = max(1, target_block_bytes // per_batch)
        if num_cores >= 2:
            cap = min(cap, max(1, N // num_cores))               # keep all TCs fed (v7x only)
        b_tile = _largest_divisor(N, cap)
        block_bytes = b_tile * per_batch

        attn = pl.pallas_call(
            functools.partial(_fused_kernel, inv_hw=inv_hw),
            out_shape=jax.ShapeDtypeStruct((N, 1, C), out_dtype),
            grid_spec=pltpu.PrefetchScalarGridSpec(
                num_scalar_prefetch=0,
                grid=(N // b_tile,),
                in_specs=[
                    pl.BlockSpec((b_tile, C, HW), lambda b: (b, 0, 0)),
                    pl.BlockSpec((C, Cr), lambda b: (0, 0)),     # weights resident in VMEM
                    pl.BlockSpec((Cr, C), lambda b: (0, 0)),
                ],
                out_specs=pl.BlockSpec((b_tile, 1, C), lambda b: (b, 0, 0)),
            ),
            compiler_params=pltpu.CompilerParams(
                dimension_semantics=("parallel",),
                vmem_limit_bytes=_vmem_limit(vmem_cap, block_bytes),
            ),
        )(x, w1t, w2t)
        return attn.reshape(N, C, 1, 1)

    # -------- split path: channel-tiled pooling + tiny one-shot MLP kernel --------
    row_bytes = HW * itemsize
    if can_ctile and sublane * row_bytes <= target_block_bytes:
        # Contiguous (c_tile, HW) slabs of NCHW -> full-bandwidth DMA, no reduction axis.
        cap_units = max(1, min(C // sublane, target_block_bytes // (sublane * row_bytes)))
        if num_cores >= 2 and N < num_cores:
            cap_units = min(cap_units, max(1, (C // sublane) // num_cores))
        c_tile = sublane * _largest_divisor(C // sublane, cap_units)
        hw_tile, n_hw, need_mask = HW, 1, False
    else:
        # Even a minimal channel slab exceeds the budget (or C is not sublane-aligned):
        # tile HW in 128-lane multiples (>= 512 lanes) and mask the ragged tail.
        c_tile = sublane if (C % sublane == 0) else C
        lane_units = max(4, target_block_bytes // (c_tile * itemsize * 128))
        hw_tile = 128 * min(_cdiv(HW, 128), lane_units)
        if hw_tile >= HW:
            hw_tile, n_hw, need_mask = HW, 1, False
        else:
            n_hw = _cdiv(HW, hw_tile)
            need_mask = (HW % hw_tile) != 0

    n_cb = C // c_tile
    block_bytes = c_tile * hw_tile * itemsize

    pooled_shape = jax.ShapeDtypeStruct((N, n_cb, 1, c_tile), jnp.float32)
    mean_p, max_p = pl.pallas_call(
        functools.partial(_pool_kernel, inv_hw=inv_hw, hw_total=HW, hw_tile=hw_tile,
                          need_mask=need_mask, multi_step=(n_hw > 1)),
        out_shape=(pooled_shape, pooled_shape),
        grid_spec=pltpu.PrefetchScalarGridSpec(
            num_scalar_prefetch=0,
            grid=(N, n_cb, n_hw),
            in_specs=[pl.BlockSpec((1, c_tile, hw_tile), lambda b, c, h: (b, c, h))],
            out_specs=[
                pl.BlockSpec((1, 1, 1, c_tile), lambda b, c, h: (b, c, 0, 0)),
                pl.BlockSpec((1, 1, 1, c_tile), lambda b, c, h: (b, c, 0, 0)),
            ],
            scratch_shapes=[
                pltpu.VMEM((1, c_tile), jnp.float32),
                pltpu.VMEM((1, c_tile), jnp.float32),
            ],
        ),
        compiler_params=pltpu.CompilerParams(
            dimension_semantics=("parallel", "parallel", "arbitrary"),
            vmem_limit_bytes=_vmem_limit(vmem_cap, block_bytes),
        ),
    )(x)

    # Free reshapes: (N, n_cb, 1, c_tile) -> (N, C), channel order preserved.
    mean2d = mean_p.reshape(N, C)
    max2d = max_p.reshape(N, C)

    vmem_spec = pl.BlockSpec(memory_space=pltpu.MemorySpace.VMEM)
    attn2d = pl.pallas_call(
        _mlp_kernel,
        out_shape=jax.ShapeDtypeStruct((N, C), out_dtype),
        in_specs=[vmem_spec, vmem_spec, vmem_spec, vmem_spec],
        out_specs=vmem_spec,
    )(mean2d, max2d, w1t, w2t)
    return attn2d.reshape(N, C, 1, 1)


# ----------------------------------------------------------------------------- reference
def channel_attention_ref(x_nchw, w1, w2):
    """Pure-JAX reference matching the PyTorch forward."""
    xf = x_nchw.astype(jnp.float32)
    avg = jnp.mean(xf, axis=(2, 3))                              # (N, C)
    mx = jnp.max(xf, axis=(2, 3))                                # (N, C)

    def mlp(v):
        h = jnp.maximum(v @ w1.astype(jnp.float32).T, 0.0)
        return h @ w2.astype(jnp.float32).T

    out = jax.nn.sigmoid(mlp(avg) + mlp(mx))                     # (N, C)
    return out.reshape(*out.shape, 1, 1).astype(x_nchw.dtype)


if __name__ == "__main__":
    key = jax.random.PRNGKey(0)
    k = jax.random.split(key, 6)

    # Module config: ChannelAttention(in_planes=64, ratio=16) -> hidden = 4.
    N, C, H, W, ratio = 2, 64, 16, 16, 16
    Cr = C // ratio
    x = jax.random.normal(k[0], (N, C, H, W), dtype=jnp.float32)
    # Conv2d weights initialized normal(0, 0.01); 1x1 kernels squeezed to 2D.
    w1 = 0.01 * jax.random.normal(k[1], (Cr, C), dtype=jnp.float32)   # fc1.weight[:, :, 0, 0]
    w2 = 0.01 * jax.random.normal(k[2], (C, Cr), dtype=jnp.float32)   # fc2.weight[:, :, 0, 0]
    y_ref = channel_attention_ref(x, w1, w2)

    # 1) Default fused path (pool + MLP + sigmoid in one kernel).
    y = channel_attention(x, w1, w2)
    jax.block_until_ready(y)
    assert y.shape == (N, C, 1, 1)
    assert jnp.allclose(y, y_ref, atol=1e-5, rtol=1e-5), "mismatch (fused path)"

    # 2) Channel-tiled contiguous-slab path (tiny budget forces the split).
    y2 = channel_attention(x, w1, w2, target_block_bytes=32 * 1024)
    jax.block_until_ready(y2)
    assert jnp.allclose(y2, y_ref, atol=1e-5, rtol=1e-5), "mismatch (channel-tiled path)"

    # 3) Spatially tiled path with a masked ragged tail: HW = 24*24 = 576, 512-wide tiles.
    N3, C3, H3, W3, ratio3 = 2, 16, 24, 24, 4
    Cr3 = C3 // ratio3
    x3 = jax.random.normal(k[3], (N3, C3, H3, W3), dtype=jnp.float32)
    w13 = 0.01 * jax.random.normal(k[4], (Cr3, C3), dtype=jnp.float32)
    w23 = 0.01 * jax.random.normal(k[5], (C3, Cr3), dtype=jnp.float32)
    y3 = channel_attention(x3, w13, w23, target_block_bytes=4 * 1024)
    jax.block_until_ready(y3)
    y3_ref = channel_attention_ref(x3, w13, w23)
    assert jnp.allclose(y3, y3_ref, atol=1e-5, rtol=1e-5), "mismatch (masked spatial-tiled path)"

    # 4) bf16 activations through the fused path (sum still accumulated in f32).
    xb = x.astype(jnp.bfloat16)
    yb = channel_attention(xb, w1, w2)
    jax.block_until_ready(yb)
    yb_ref = channel_attention_ref(xb, w1, w2)
    assert yb.dtype == jnp.bfloat16
    assert jnp.allclose(yb.astype(jnp.float32), yb_ref.astype(jnp.float32),
                        atol=2e-2, rtol=2e-2), "mismatch (bf16 fused path)"

    print("KERNEL_OK")
</pallas_src>

<mosaic_0001>
module attributes {stable_mosaic.version = 11 : i64} {
  func.func @_fused_kernel(%arg0: i32, %arg1: memref<2x64x256xf32, #tpu.memory_space<vmem>>, %arg2: memref<64x4xf32, #tpu.memory_space<vmem>>, %arg3: memref<4x64xf32, #tpu.memory_space<vmem>>, %arg4: memref<2x1x64xf32, #tpu.memory_space<vmem>>) attributes {dimension_semantics = [#tpu.dimension_semantics<parallel>], iteration_bounds = array<i64: 1>, scalar_prefetch = 0 : i64, scratch_operands = 0 : i64, tpu.core_type = #tpu.core_type<tc>, window_params = [{transform_indices = @transform_0, window_bounds = array<i64: 2, 64, 256>}, {pipeline_mode = #tpu.pipeline_mode<synchronous>, transform_indices = @transform_1, window_bounds = array<i64: 64, 4>}, {pipeline_mode = #tpu.pipeline_mode<synchronous>, transform_indices = @transform_2, window_bounds = array<i64: 4, 64>}, {transform_indices = @transform_3, window_bounds = array<i64: 2, 1, 64>}]} {
    %c0 = arith.constant 0 : index
    %c0_0 = arith.constant 0 : index
    %c0_1 = arith.constant 0 : index
    %0 = vector.load %arg1[%c0, %c0_0, %c0_1] : memref<2x64x256xf32, #tpu.memory_space<vmem>>, vector<2x64x256xf32>
    %cst = arith.constant dense<0.000000e+00> : vector<2x64xf32>
    %1 = vector.multi_reduction <add>, %0, %cst [2] : vector<2x64x256xf32> to vector<2x64xf32>
    %cst_2 = arith.constant 3.906250e-03 : f32
    %2 = vector.broadcast %cst_2 : f32 to vector<2x64xf32>
    %3 = arith.mulf %1, %2 : vector<2x64xf32>
    %cst_3 = arith.constant dense<0xFF800000> : vector<2x64xf32>
    %4 = vector.multi_reduction <maximumf>, %0, %cst_3 [2] : vector<2x64x256xf32> to vector<2x64xf32>
    %c0_4 = arith.constant 0 : index
    %c0_5 = arith.constant 0 : index
    %5 = vector.load %arg2[%c0_4, %c0_5] : memref<64x4xf32, #tpu.memory_space<vmem>>, vector<64x4xf32>
    %c0_6 = arith.constant 0 : index
    %c0_7 = arith.constant 0 : index
    %6 = vector.load %arg3[%c0_6, %c0_7] : memref<4x64xf32, #tpu.memory_space<vmem>>, vector<4x64xf32>
    %7 = tpu.concatenate %3, %4 in 0 : vector<2x64xf32>, vector<2x64xf32> -> vector<4x64xf32>
    %cst_8 = arith.constant dense<0.000000e+00> : vector<4x4xf32>
    %8 = tpu.matmul %7, %5, %cst_8 {dimension_numbers = #tpu.dot_dimension_numbers<[1], [0], [0], [1], [0, 0, 1, 1], [], []>} : vector<4x64xf32>, vector<64x4xf32>, vector<4x4xf32> -> vector<4x4xf32>
    %cst_9 = arith.constant 0.000000e+00 : f32
    %9 = vector.broadcast %cst_9 : f32 to vector<4x4xf32>
    %10 = arith.maximumf %8, %9 : vector<4x4xf32>
    %cst_10 = arith.constant dense<0.000000e+00> : vector<4x64xf32>
    %11 = tpu.matmul %10, %6, %cst_10 {dimension_numbers = #tpu.dot_dimension_numbers<[1], [0], [0], [1], [0, 0, 1, 1], [], []>} : vector<4x4xf32>, vector<4x64xf32>, vector<4x64xf32> -> vector<4x64xf32>
    %12 = vector.extract_strided_slice %11 {offsets = [0, 0], sizes = [2, 64], strides = [1, 1]} : vector<4x64xf32> to vector<2x64xf32>
    %13 = vector.extract_strided_slice %11 {offsets = [2, 0], sizes = [2, 64], strides = [1, 1]} : vector<4x64xf32> to vector<2x64xf32>
    %14 = arith.addf %12, %13 : vector<2x64xf32>
    %15 = arith.negf %14 : vector<2x64xf32>
    %16 = math.exp %15 : vector<2x64xf32>
    %cst_11 = arith.constant 1.000000e+00 : f32
    %17 = vector.broadcast %cst_11 : f32 to vector<2x64xf32>
    %18 = arith.addf %17, %16 : vector<2x64xf32>
    %19 = arith.divf %17, %18 : vector<2x64xf32>
    %20 = vector.shape_cast %19 : vector<2x64xf32> to vector<2x1x64xf32>
    %c0_12 = arith.constant 0 : index
    %c0_13 = arith.constant 0 : index
    %c0_14 = arith.constant 0 : index
    %21 = vector.load %arg4[%c0_12, %c0_13, %c0_14] : memref<2x1x64xf32, #tpu.memory_space<vmem>>, vector<2x1x64xf32>
    tpu.vector_store %arg4[%c0_12, %c0_13, %c0_14], %20 {strides = array<i32>} : memref<2x1x64xf32, #tpu.memory_space<vmem>>, vector<2x1x64xf32>,
    return
  }
  func.func @transform_0(%arg0: i32) -> (i32, i32, i32) {
    %c0_i32 = arith.constant 0 : i32
    %c0_i32_0 = arith.constant 0 : i32
    %c0_i32_1 = arith.constant 0 : i32
    return %arg0, %c0_i32, %c0_i32_0 : i32, i32, i32
  }
  func.func @transform_1(%arg0: i32) -> (i32, i32) {
    %c0_i32 = arith.constant 0 : i32
    %c0_i32_0 = arith.constant 0 : i32
    %c0_i32_1 = arith.constant 0 : i32
    return %c0_i32, %c0_i32_0 : i32, i32
  }
  func.func @transform_2(%arg0: i32) -> (i32, i32) {
    %c0_i32 = arith.constant 0 : i32
    %c0_i32_0 = arith.constant 0 : i32
    %c0_i32_1 = arith.constant 0 : i32
    return %c0_i32, %c0_i32_0 : i32, i32
  }
  func.func @transform_3(%arg0: i32) -> (i32, i32, i32) {
    %c0_i32 = arith.constant 0 : i32
    %c0_i32_0 = arith.constant 0 : i32
    %c0_i32_1 = arith.constant 0 : i32
    return %arg0, %c0_i32, %c0_i32_0 : i32, i32, i32
  }
}

</mosaic_0001>

<llo_original>
// kernel: tpu_custom_call.1
$region0: #{tpu_custom_call.1}
  #allocation0 [shape = 'u32[]', space=smem, size = 0x4, offset = 0x4, fixed_abs, tag = 'smem constant byte address 0x4 - core index']
  #allocation1 [shape = 'u32[144,128]{1,0:T(1,128)}', space=vmem, size = 0x12000, scoped, tag = 'internal scratch']
  %s0 = inlined_call_operand.hbm [shape: f32[2,64,256], index: 0, kind: input, shape index: {}]
  %s1 = inlined_call_operand.vmem [shape: f32[64,4], index: 1, kind: input, shape index: {}]
  %s2 = inlined_call_operand.vmem [shape: f32[4,64], index: 2, kind: input, shape index: {}]
  %s3 = inlined_call_operand.hbm [shape: f32[2,1,64], index: 3, kind: output, shape index: {}]
  %s4 = sld [smem:[#allocation0]]
  $region26: #{tpu_custom_call.1} parent=0
    _
  %s6 = ssub.s32 1, %s4
  %s7 = scalar_select 0, %s6, %s4
  $region1: #{tpu_custom_call.1} parent=0
    #allocation2 [shape = 'u8[131072]{0}', space=vmem, size = 0x20000, scoped, tag = 'input window, operand 0, single buffered']
    #allocation3 [shape = 's32[1]{0}', space=sflag, size = 0x4, scoped, tag = 'scoped memory for tpu_custom_call.1']
    #allocation4 [shape = 's32[1]{0}', space=sflag, size = 0x4, scoped, tag = 'scoped memory for tpu_custom_call.1']
    #allocation5 [shape = 'u8[1024]{0}', space=vmem, size = 0x400, scoped, tag = 'output window, operand 0, single buffered']
    %8 = vsyncpa [#allocation3], 0
    %9 = vsyncpa [#allocation4], 0
    // Predicated region
    $region2: #{tpu_custom_call.1} parent=1 // pred_check
      _
    $region3: #{tpu_custom_call.1} parent=1 // pred_check_branch
      %11 = sbr.rel (0) target = $region5
    $region4: #{tpu_custom_call.1} parent=1 // pred_region
      %s13 = ssub.s32 4096, 4096
      %14 = vsyncadd [#allocation3], %s13
      %s15 = sshll.u32 [#allocation2], 4
      %s16 = int_to_ptr.vmem [resolvable:$true] %s15
      %21 = dma.hbm_to_vmem [thread:$0]  %s0, 4096, %s16, [#allocation3], 256, 256, 16
    $region5: #{tpu_custom_call.1} parent=1 // pred_fallthru
      _
    // Predicated region
    $region6: #{tpu_custom_call.1} parent=1 // pred_check
      _
    $region7: #{tpu_custom_call.1} parent=1 // pred_check_branch
      %23 = sbr.rel (0) target = $region9
    $region8: #{tpu_custom_call.1} parent=1 // pred_region
      _
    $region9: #{tpu_custom_call.1} parent=1 // pred_fallthru
      _
    // Predicated region
    $region10: #{tpu_custom_call.1} parent=1 // pred_check
      _
    $region11: #{tpu_custom_call.1} parent=1 // pred_check_branch
      %25 = sbr.rel (0) target = $region13
    $region12: #{tpu_custom_call.1} parent=1 // pred_region
      _
    $region13: #{tpu_custom_call.1} parent=1 // pred_fallthru
      _
    // Predicated region
    $region14: #{tpu_custom_call.1} parent=1 // pred_check
      _
    $region15: #{tpu_custom_call.1} parent=1 // pred_check_branch
      %27 = sbr.rel (0) target = $region17
    $region16: #{tpu_custom_call.1} parent=1 // pred_region
      %28 = dma.done [#allocation3], 4096
    $region17: #{tpu_custom_call.1} parent=1 // pred_fallthru
      _
    %v29 = vld [vmem:[#allocation2] sm:$0xff]
    %v30 = vld [vmem:[#allocation2 + $0x8] sm:$0xff]
    %v31 = vld [vmem:[#allocation2 + $0x10] sm:$0xff]
    %v32 = vld [vmem:[#allocation2 + $0x18] sm:$0xff]
    %v33 = vld [vmem:[#allocation2 + $0x20] sm:$0xff]
    %v34 = vld [vmem:[#allocation2 + $0x28] sm:$0xff]
    %v35 = vld [vmem:[#allocation2 + $0x30] sm:$0xff]
    %v36 = vld [vmem:[#allocation2 + $0x38] sm:$0xff]
    %v37 = vld [vmem:[#allocation2 + $0x40] sm:$0xff]
    %v38 = vld [vmem:[#allocation2 + $0x48] sm:$0xff]
    %v39 = vld [vmem:[#allocation2 + $0x50] sm:$0xff]
    %v40 = vld [vmem:[#allocation2 + $0x58] sm:$0xff]
    %v41 = vld [vmem:[#allocation2 + $0x60] sm:$0xff]
    %v42 = vld [vmem:[#allocation2 + $0x68] sm:$0xff]
    %v43 = vld [vmem:[#allocation2 + $0x70] sm:$0xff]
    %v44 = vld [vmem:[#allocation2 + $0x78] sm:$0xff]
    %v45 = vld [vmem:[#allocation2 + $0x80] sm:$0xff]
    %v46 = vld [vmem:[#allocation2 + $0x88] sm:$0xff]
    %v47 = vld [vmem:[#allocation2 + $0x90] sm:$0xff]
    %v48 = vld [vmem:[#allocation2 + $0x98] sm:$0xff]
    %v49 = vld [vmem:[#allocation2 + $0xa0] sm:$0xff]
    %v50 = vld [vmem:[#allocation2 + $0xa8] sm:$0xff]
    %v51 = vld [vmem:[#allocation2 + $0xb0] sm:$0xff]
    %v52 = vld [vmem:[#allocation2 + $0xb8] sm:$0xff]
    %v53 = vld [vmem:[#allocation2 + $0xc0] sm:$0xff]
    %v54 = vld [vmem:[#allocation2 + $0xc8] sm:$0xff]
    %v55 = vld [vmem:[#allocation2 + $0xd0] sm:$0xff]
    %v56 = vld [vmem:[#allocation2 + $0xd8] sm:$0xff]
    %v57 = vld [vmem:[#allocation2 + $0xe0] sm:$0xff]
    %v58 = vld [vmem:[#allocation2 + $0xe8] sm:$0xff]
    %v59 = vld [vmem:[#allocation2 + $0xf0] sm:$0xff]
    %v60 = vld [vmem:[#allocation2 + $0xf8] sm:$0xff]
    %v61 = vadd.f32 %v29, %v30
    %62 = vadd.xlane.f32.xlu0 %v61
    %v63 = vpop.xlane.xlu0 %62
    %v64 = vadd.f32 %v31, %v32
    %65 = vadd.xlane.f32.xlu0 %v64
    %v66 = vpop.xlane.xlu0 %65
    %v67 = vadd.f32 %v33, %v34
    %68 = vadd.xlane.f32.xlu0 %v67
    %v69 = vpop.xlane.xlu0 %68
    %v70 = vadd.f32 %v35, %v36
    %71 = vadd.xlane.f32.xlu0 %v70
    %v72 = vpop.xlane.xlu0 %71
    %v73 = vadd.f32 %v37, %v38
    %74 = vadd.xlane.f32.xlu0 %v73
    %v75 = vpop.xlane.xlu0 %74
    %v76 = vadd.f32 %v39, %v40
    %77 = vadd.xlane.f32.xlu0 %v76
    %v78 = vpop.xlane.xlu0 %77
    %v79 = vadd.f32 %v41, %v42
    %80 = vadd.xlane.f32.xlu0 %v79
    %v81 = vpop.xlane.xlu0 %80
    %v82 = vadd.f32 %v43, %v44
    %83 = vadd.xlane.f32.xlu0 %v82
    %v84 = vpop.xlane.xlu0 %83
    %v85 = vadd.f32 %v45, %v46
    %86 = vadd.xlane.f32.xlu0 %v85
    %v87 = vpop.xlane.xlu0 %86
    %v88 = vadd.f32 %v47, %v48
    %89 = vadd.xlane.f32.xlu0 %v88
    %v90 = vpop.xlane.xlu0 %89
    %v91 = vadd.f32 %v49, %v50
    %92 = vadd.xlane.f32.xlu0 %v91
    %v93 = vpop.xlane.xlu0 %92
    %v94 = vadd.f32 %v51, %v52
    %95 = vadd.xlane.f32.xlu0 %v94
    %v96 = vpop.xlane.xlu0 %95
    %v97 = vadd.f32 %v53, %v54
    %98 = vadd.xlane.f32.xlu0 %v97
    %v99 = vpop.xlane.xlu0 %98
    %v100 = vadd.f32 %v55, %v56
    %101 = vadd.xlane.f32.xlu0 %v100
    %v102 = vpop.xlane.xlu0 %101
    %v103 = vadd.f32 %v57, %v58
    %104 = vadd.xlane.f32.xlu0 %v103
    %v105 = vpop.xlane.xlu0 %104
    %v106 = vadd.f32 %v59, %v60
    %107 = vadd.xlane.f32.xlu0 %v106
    %v108 = vpop.xlane.xlu0 %107
    %v109 = vmul.f32 %v63, 0.00390625
    %v110 = vmul.f32 %v66, 0.00390625
    %v111 = vmul.f32 %v69, 0.00390625
    %v112 = vmul.f32 %v72, 0.00390625
    %v113 = vmul.f32 %v75, 0.00390625
    %v114 = vmul.f32 %v78, 0.00390625
    %v115 = vmul.f32 %v81, 0.00390625
    %v116 = vmul.f32 %v84, 0.00390625
    %v117 = vmul.f32 %v87, 0.00390625
    %v118 = vmul.f32 %v90, 0.00390625
    %v119 = vmul.f32 %v93, 0.00390625
    %v120 = vmul.f32 %v96, 0.00390625
    %v121 = vmul.f32 %v99, 0.00390625
    %v122 = vmul.f32 %v102, 0.00390625
    %v123 = vmul.f32 %v105, 0.00390625
    %v124 = vmul.f32 %v108, 0.00390625
    %v125 = vmax.f32 %v29, %v30
    %126 = vmax.xlane.f32.xlu0 %v125
    %v127 = vpop.xlane.xlu0 %126
    %v128 = vmax.f32 %v31, %v32
    %129 = vmax.xlane.f32.xlu0 %v128
    %v130 = vpop.xlane.xlu0 %129
    %v131 = vmax.f32 %v33, %v34
    %132 = vmax.xlane.f32.xlu0 %v131
    %v133 = vpop.xlane.xlu0 %132
    %v134 = vmax.f32 %v35, %v36
    %135 = vmax.xlane.f32.xlu0 %v134
    %v136 = vpop.xlane.xlu0 %135
    %v137 = vmax.f32 %v37, %v38
    %138 = vmax.xlane.f32.xlu0 %v137
    %v139 = vpop.xlane.xlu0 %138
    %v140 = vmax.f32 %v39, %v40
    %141 = vmax.xlane.f32.xlu0 %v140
    %v142 = vpop.xlane.xlu0 %141
    %v143 = vmax.f32 %v41, %v42
    %144 = vmax.xlane.f32.xlu0 %v143
    %v145 = vpop.xlane.xlu0 %144
    %v146 = vmax.f32 %v43, %v44
    %147 = vmax.xlane.f32.xlu0 %v146
    %v148 = vpop.xlane.xlu0 %147
    %v149 = vmax.f32 %v45, %v46
    %150 = vmax.xlane.f32.xlu0 %v149
    %v151 = vpop.xlane.xlu0 %150
    %v152 = vmax.f32 %v47, %v48
    %153 = vmax.xlane.f32.xlu0 %v152
    %v154 = vpop.xlane.xlu0 %153
    %v155 = vmax.f32 %v49, %v50
    %156 = vmax.xlane.f32.xlu0 %v155
    %v157 = vpop.xlane.xlu0 %156
    %v158 = vmax.f32 %v51, %v52
    %159 = vmax.xlane.f32.xlu0 %v158
    %v160 = vpop.xlane.xlu0 %159
    %v161 = vmax.f32 %v53, %v54
    %162 = vmax.xlane.f32.xlu0 %v161
    %v163 = vpop.xlane.xlu0 %162
    %v164 = vmax.f32 %v55, %v56
    %165 = vmax.xlane.f32.xlu0 %v164
    %v166 = vpop.xlane.xlu0 %165
    %v167 = vmax.f32 %v57, %v58
    %168 = vmax.xlane.f32.xlu0 %v167
    %v169 = vpop.xlane.xlu0 %168
    %v170 = vmax.f32 %v59, %v60
    %171 = vmax.xlane.f32.xlu0 %v170
    %v172 = vpop.xlane.xlu0 %171
    %v173 = vld [vmem:[%s1] sm:$0xff]
    %v174 = vld [vmem:[%s1 + $0x8] sm:$0xff]
    %v175 = vld [vmem:[%s1 + $0x10] sm:$0xff]
    %v176 = vld [vmem:[%s1 + $0x18] sm:$0xff]
    %v177 = vld [vmem:[%s1 + $0x20] sm:$0xff]
    %v178 = vld [vmem:[%s1 + $0x28] sm:$0xff]
    %v179 = vld [vmem:[%s1 + $0x30] sm:$0xff]
    %v180 = vld [vmem:[%s1 + $0x38] sm:$0xff]
    %v181 = vld [vmem:[%s2] sm:$0xf]
    %v198 = vlaneseq
    %v199 = vand.u32 %v198, 127
    %v200 = vlaneseq
    %v201 = vshrl.u32 %v200, 7
    %v202 = vsub.s32 %v199, %v201
    %v203 = vrot.slane %v109, %v202
    %v204 = vadd.s32 %v199, 4294967288
    %v205 = vlaneseq
    %v206 = vshrl.u32 %v205, 7
    %v207 = vsub.s32 %v204, %v206
    %v208 = vrot.slane %v110, %v207
    %vm209 = vcmask 130112
    %v210 = vsel %vm209, %v208, %v203
    %v211 = vadd.s32 %v199, 4294967280
    %v212 = vlaneseq
    %v213 = vshrl.u32 %v212, 7
    %v214 = vsub.s32 %v211, %v213
    %v215 = vrot.slane %v111, %v214
    %vm216 = vcmask 195712
    %v217 = vsel %vm216, %v215, %v210
    %v218 = vadd.s32 %v199, 4294967272
    %v219 = vlaneseq
    %v220 = vshrl.u32 %v219, 7
    %v221 = vsub.s32 %v218, %v220
    %v222 = vrot.slane %v112, %v221
    %vm223 = vcmask 261312
    %v224 = vsel %vm223, %v222, %v217
    %v225 = vadd.s32 %v199, 4294967264
    %v226 = vlaneseq
    %v227 = vshrl.u32 %v226, 7
    %v228 = vsub.s32 %v225, %v227
    %v229 = vrot.slane %v113, %v228
    %vm230 = vcmask 326912
    %v231 = vsel %vm230, %v229, %v224
    %v232 = vadd.s32 %v199, 4294967256
    %v233 = vlaneseq
    %v234 = vshrl.u32 %v233, 7
    %v235 = vsub.s32 %v232, %v234
    %v236 = vrot.slane %v114, %v235
    %vm237 = vcmask 392512
    %v238 = vsel %vm237, %v236, %v231
    %v239 = vadd.s32 %v199, 4294967248
    %v240 = vlaneseq
    %v241 = vshrl.u32 %v240, 7
    %v242 = vsub.s32 %v239, %v241
    %v243 = vrot.slane %v115, %v242
    %vm244 = vcmask 458112
    %v245 = vsel %vm244, %v243, %v238
    %v246 = vadd.s32 %v199, 4294967240
    %v247 = vlaneseq
    %v248 = vshrl.u32 %v247, 7
    %v249 = vsub.s32 %v246, %v248
    %v250 = vrot.slane %v116, %v249
    %vm251 = vcmask 523712
    %v252 = vsel %vm251, %v250, %v245
    %v253 = vlaneseq
    %v254 = vshrl.u32 %v253, 7
    %v255 = vsub.s32 %v199, %v254
    %v256 = vrot.slane %v117, %v255
    %v257 = vlaneseq
    %v258 = vshrl.u32 %v257, 7
    %v259 = vsub.s32 %v204, %v258
    %v260 = vrot.slane %v118, %v259
    %v261 = vsel %vm209, %v260, %v256
    %v262 = vlaneseq
    %v263 = vshrl.u32 %v262, 7
    %v264 = vsub.s32 %v211, %v263
    %v265 = vrot.slane %v119, %v264
    %v266 = vsel %vm216, %v265, %v261
    %v267 = vlaneseq
    %v268 = vshrl.u32 %v267, 7
    %v269 = vsub.s32 %v218, %v268
    %v270 = vrot.slane %v120, %v269
    %v271 = vsel %vm223, %v270, %v266
    %v272 = vlaneseq
    %v273 = vshrl.u32 %v272, 7
    %v274 = vsub.s32 %v225, %v273
    %v275 = vrot.slane %v121, %v274
    %v276 = vsel %vm230, %v275, %v271
    %v277 = vlaneseq
    %v278 = vshrl.u32 %v277, 7
    %v279 = vsub.s32 %v232, %v278
    %v280 = vrot.slane %v122, %v279
    %v281 = vsel %vm237, %v280, %v276
    %v282 = vlaneseq
    %v283 = vshrl.u32 %v282, 7
    %v284 = vsub.s32 %v239, %v283
    %v285 = vrot.slane %v123, %v284
    %v286 = vsel %vm244, %v285, %v281
    %v287 = vlaneseq
    %v288 = vshrl.u32 %v287, 7
    %v289 = vsub.s32 %v246, %v288
    %v290 = vrot.slane %v124, %v289
    %v291 = vsel %vm251, %v290, %v286
    %vm292 = vcmask 1041409
    %v293 = vsel %vm292, %v291, %v252
    %v311 = vlaneseq
    %v312 = vshrl.u32 %v311, 7
    %v313 = vsub.s32 %v199, %v312
    %v314 = vrot.slane %v127, %v313
    %v315 = vlaneseq
    %v316 = vshrl.u32 %v315, 7
    %v317 = vsub.s32 %v204, %v316
    %v318 = vrot.slane %v130, %v317
    %v319 = vsel %vm209, %v318, %v314
    %v320 = vlaneseq
    %v321 = vshrl.u32 %v320, 7
    %v322 = vsub.s32 %v211, %v321
    %v323 = vrot.slane %v133, %v322
    %v324 = vsel %vm216, %v323, %v319
    %v325 = vlaneseq
    %v326 = vshrl.u32 %v325, 7
    %v327 = vsub.s32 %v218, %v326
    %v328 = vrot.slane %v136, %v327
    %v329 = vsel %vm223, %v328, %v324
    %v330 = vlaneseq
    %v331 = vshrl.u32 %v330, 7
    %v332 = vsub.s32 %v225, %v331
    %v333 = vrot.slane %v139, %v332
    %v334 = vsel %vm230, %v333, %v329
    %v335 = vlaneseq
    %v336 = vshrl.u32 %v335, 7
    %v337 = vsub.s32 %v232, %v336
    %v338 = vrot.slane %v142, %v337
    %v339 = vsel %vm237, %v338, %v334
    %v340 = vlaneseq
    %v341 = vshrl.u32 %v340, 7
    %v342 = vsub.s32 %v239, %v341
    %v343 = vrot.slane %v145, %v342
    %v344 = vsel %vm244, %v343, %v339
    %v345 = vlaneseq
    %v346 = vshrl.u32 %v345, 7
    %v347 = vsub.s32 %v246, %v346
    %v348 = vrot.slane %v148, %v347
    %v349 = vsel %vm251, %v348, %v344
    %v350 = vlaneseq
    %v351 = vshrl.u32 %v350, 7
    %v352 = vsub.s32 %v199, %v351
    %v353 = vrot.slane %v151, %v352
    %v354 = vlaneseq
    %v355 = vshrl.u32 %v354, 7
    %v356 = vsub.s32 %v204, %v355
    %v357 = vrot.slane %v154, %v356
    %v358 = vsel %vm209, %v357, %v353
    %v359 = vlaneseq
    %v360 = vshrl.u32 %v359, 7
    %v361 = vsub.s32 %v211, %v360
    %v362 = vrot.slane %v157, %v361
    %v363 = vsel %vm216, %v362, %v358
    %v364 = vlaneseq
    %v365 = vshrl.u32 %v364, 7
    %v366 = vsub.s32 %v218, %v365
    %v367 = vrot.slane %v160, %v366
    %v368 = vsel %vm223, %v367, %v363
    %v369 = vlaneseq
    %v370 = vshrl.u32 %v369, 7
    %v371 = vsub.s32 %v225, %v370
    %v372 = vrot.slane %v163, %v371
    %v373 = vsel %vm230, %v372, %v368
    %v374 = vlaneseq
    %v375 = vshrl.u32 %v374, 7
    %v376 = vsub.s32 %v232, %v375
    %v377 = vrot.slane %v166, %v376
    %v378 = vsel %vm237, %v377, %v373
    %v379 = vlaneseq
    %v380 = vshrl.u32 %v379, 7
    %v381 = vsub.s32 %v239, %v380
    %v382 = vrot.slane %v169, %v381
    %v383 = vsel %vm244, %v382, %v378
    %v384 = vlaneseq
    %v385 = vshrl.u32 %v384, 7
    %v386 = vsub.s32 %v246, %v385
    %v387 = vrot.slane %v172, %v386
    %v388 = vsel %vm251, %v387, %v383
    %vm389 = vcmask 1043459
    %v390 = vsel %vm389, %v388, %v349
    %vm392 = vcmask 1041408
    %v393 = vsel %vm392, %v293, %v390
    %vm394 = vcmask 523264
    %v396 = vsel %vm394, %v393, 0
    %398 = vmatprep.subr.mxu0 0.0
    %399 = vmatpush1.msra.mxu0 %v173
    %400 = vmatprep.subr.mxu0 0.0
    %401 = vmatpush1.msra.mxu0 %v174
    %402 = vmatprep.subr.mxu0 0.0
    %403 = vmatpush1.msra.mxu0 %v175
    %404 = vmatprep.subr.mxu0 0.0
    %405 = vmatpush1.msra.mxu0 %v176
    %406 = vmatprep.subr.mxu0 0.0
    %407 = vmatpush1.msra.mxu0 %v177
    %408 = vmatprep.subr.mxu0 0.0
    %409 = vmatpush1.msra.mxu0 %v178
    %410 = vmatprep.subr.mxu0 0.0
    %411 = vmatpush1.msra.mxu0 %v179
    %412 = vmatprep.subr.mxu0 0.0
    %413 = vmatpush1.msra.mxu0 %v180
    %414 = vmatprep.subr.mxu0 0.0
    %415 = vmatpush1.msra.mxu0 0.0
    %416 = vmatprep.subr.mxu0 0.0
    %417 = vmatpush1.msra.mxu0 0.0
    %418 = vmatprep.subr.mxu0 0.0
    %419 = vmatpush1.msra.mxu0 0.0
    %420 = vmatprep.subr.mxu0 0.0
    %421 = vmatpush1.msra.mxu0 0.0
    %422 = vmatprep.subr.mxu0 0.0
    %423 = vmatpush1.msra.mxu0 0.0
    %424 = vmatprep.subr.mxu0 0.0
    %425 = vmatpush1.msra.mxu0 0.0
    %426 = vmatprep.subr.mxu0 0.0
    %427 = vmatpush1.msra.mxu0 0.0
    %428 = vmatprep.subr.mxu0 0.0
    %429 = vmatpush1.msra.mxu0 0.0
    %430 = vmatprep.subr.mxu0 0.0
    %431 = vmatpush1.msra.mxu0 0.0
    %432 = vmatprep.subr.mxu0 0.0
    %433 = vmatpush1.msra.mxu0 0.0
    %434 = vmatprep.subr.mxu0 0.0
    %435 = vmatpush1.msra.mxu0 0.0
    %436 = vmatprep.subr.mxu0 0.0
    %437 = vmatpush1.msra.mxu0 0.0
    %438 = vmatprep.subr.mxu0 0.0
    %439 = vmatpush1.msra.mxu0 0.0
    %440 = vmatprep.subr.mxu0 0.0
    %441 = vmatpush1.msra.mxu0 0.0
    %442 = vmatprep.subr.mxu0 0.0
    %443 = vmatpush1.msra.mxu0 0.0
    %444 = vmatprep.subr.mxu0 0.0
    %445 = vmatpush1.msra.mxu0 0.0
    %446 = vmatprep.subr.mxu0 0.0
    %447 = vmatpush1.msra.mxu0 0.0
    %448 = vmatprep.subr.mxu0 0.0
    %449 = vmatpush1.msra.mxu0 0.0
    %450 = vmatprep.subr.mxu0 0.0
    %451 = vmatpush1.msra.mxu0 0.0
    %452 = vmatprep.subr.mxu0 0.0
    %453 = vmatpush1.msra.mxu0 0.0
    %454 = vmatprep.subr.mxu0 0.0
    %455 = vmatpush1.msra.mxu0 0.0
    %456 = vmatprep.subr.mxu0 0.0
    %457 = vmatpush1.msra.mxu0 0.0
    %458 = vmatprep.subr.mxu0 0.0
    %459 = vmatpush1.msra.mxu0 0.0
    %460 = vmatprep.subr.mxu0 0.0
    %461 = vmatpush1.msra.mxu0 0.0
    %462 = vmatprep.mubr.f32.mxu0 0.0
    %463 = vmatmul.mubr.f32.gmra.mrb[0].mxu0 %v396
    %v464 = vpop.f32.mrb[0].mxu0
    %v465 = vadd.f32 0.0, %v464
    %v466 = vpop.f32.mrb[0].mxu0
    %467 = vdwg.mxu0
    %v468 = vmax.f32 %v465, 0.0
    %vm469 = vcmask 31744
    %v471 = vsel %vm469, %v468, 0
    %vm473 = vcmask 1043456
    %v475 = vsel %vm473, %v181, 0
    %477 = vmatprep.subr.mxu0 0.0
    %478 = vmatpush1.msra.mxu0 %v475
    %479 = vmatprep.subr.mxu0 0.0
    %480 = vmatpush1.msra.mxu0 0.0
    %481 = vmatprep.subr.mxu0 0.0
    %482 = vmatpush1.msra.mxu0 0.0
    %483 = vmatprep.subr.mxu0 0.0
    %484 = vmatpush1.msra.mxu0 0.0
    %485 = vmatprep.subr.mxu0 0.0
    %486 = vmatpush1.msra.mxu0 0.0
    %487 = vmatprep.subr.mxu0 0.0
    %488 = vmatpush1.msra.mxu0 0.0
    %489 = vmatprep.subr.mxu0 0.0
    %490 = vmatpush1.msra.mxu0 0.0
    %491 = vmatprep.subr.mxu0 0.0
    %492 = vmatpush1.msra.mxu0 0.0
    %493 = vmatprep.subr.mxu0 0.0
    %494 = vmatpush1.msra.mxu0 0.0
    %495 = vmatprep.subr.mxu0 0.0
    %496 = vmatpush1.msra.mxu0 0.0
    %497 = vmatprep.subr.mxu0 0.0
    %498 = vmatpush1.msra.mxu0 0.0
    %499 = vmatprep.subr.mxu0 0.0
    %500 = vmatpush1.msra.mxu0 0.0
    %501 = vmatprep.subr.mxu0 0.0
    %502 = vmatpush1.msra.mxu0 0.0
    %503 = vmatprep.subr.mxu0 0.0
    %504 = vmatpush1.msra.mxu0 0.0
    %505 = vmatprep.subr.mxu0 0.0
    %506 = vmatpush1.msra.mxu0 0.0
    %507 = vmatprep.subr.mxu0 0.0
    %508 = vmatpush1.msra.mxu0 0.0
    %509 = vmatprep.subr.mxu0 0.0
    %510 = vmatpush1.msra.mxu0 0.0
    %511 = vmatprep.subr.mxu0 0.0
    %512 = vmatpush1.msra.mxu0 0.0
    %513 = vmatprep.subr.mxu0 0.0
    %514 = vmatpush1.msra.mxu0 0.0
    %515 = vmatprep.subr.mxu0 0.0
    %516 = vmatpush1.msra.mxu0 0.0
    %517 = vmatprep.subr.mxu0 0.0
    %518 = vmatpush1.msra.mxu0 0.0
    %519 = vmatprep.subr.mxu0 0.0
    %520 = vmatpush1.msra.mxu0 0.0
    %521 = vmatprep.subr.mxu0 0.0
    %522 = vmatpush1.msra.mxu0 0.0
    %523 = vmatprep.subr.mxu0 0.0
    %524 = vmatpush1.msra.mxu0 0.0
    %525 = vmatprep.subr.mxu0 0.0
    %526 = vmatpush1.msra.mxu0 0.0
    %527 = vmatprep.subr.mxu0 0.0
    %528 = vmatpush1.msra.mxu0 0.0
    %529 = vmatprep.subr.mxu0 0.0
    %530 = vmatpush1.msra.mxu0 0.0
    %531 = vmatprep.subr.mxu0 0.0
    %532 = vmatpush1.msra.mxu0 0.0
    %533 = vmatprep.subr.mxu0 0.0
    %534 = vmatpush1.msra.mxu0 0.0
    %535 = vmatprep.subr.mxu0 0.0
    %536 = vmatpush1.msra.mxu0 0.0
    %537 = vmatprep.subr.mxu0 0.0
    %538 = vmatpush1.msra.mxu0 0.0
    %539 = vmatprep.subr.mxu0 0.0
    %540 = vmatpush1.msra.mxu0 0.0
    %541 = vmatprep.mubr.f32.mxu0 0.0
    %542 = vmatmul.mubr.f32.gmra.mrb[0].mxu0 %v471
    %v543 = vpop.f32.mrb[0].mxu0
    %v544 = vadd.f32 0.0, %v543
    %v545 = vpop.f32.mrb[0].mxu0
    %546 = vdwg.mxu0
    %v548 = vrot.slane %v544, 2
    %v550 = vadd.f32 %v544, %v548
    %v551 = vxor.u32 %v550, 2147483648
    %v552 = vmul.f32 %v551, 1.442695
    %v553 = vpow.pop %v552
    %v554 = vadd.f32 %v553, 1.0
    %v555 = vrcp.pop %v554
    %v556 = vmul.f32 1.0, %v555
    %v559 = vunpack.c.l.s4 1966171168
    %v560 = vunpack.c.0.s8 %v559
    %v561 = vlaneseq
    %v562 = vshrl.u32 %v561, 7
    %v563 = vsub.s32 %v560, %v562
    %v564 = vrot.slane %v556, %v563
    %v565 = vcombine.high %v564, %v564
    %v567 = vunpack.c.l.s4 1966171168
    %v568 = vunpack.c.0.s8 %v567
    %v569 = vlaneseq
    %v570 = vshrl.u32 %v569, 7
    %v571 = vsub.s32 %v568, %v570
    %v572 = vrot.slane %v564, %v571
    %v574 = vunpack.c.l.s4 1966171168
    %v575 = vunpack.c.0.s8 %v574
    %v576 = vlaneseq
    %v577 = vshrl.u32 %v576, 7
    %v578 = vsub.s32 %v575, %v577
    %v579 = vrot.slane %v565, %v578
    %vm582 = vcmask 516096
    %583 = vst.msk [vmem:[#allocation5] sm:$0x1] %vm582, %v572
    %584 = vst.msk [vmem:[#allocation5 + $0x1] sm:$0x1] %vm582, %v579
    // Predicated region
    $region18: #{tpu_custom_call.1} parent=1 // pred_check
      _
    $region19: #{tpu_custom_call.1} parent=1 // pred_check_branch
      %586 = sbr.rel (0) target = $region21
    $region20: #{tpu_custom_call.1} parent=1 // pred_region
      %s588 = ssub.s32 32, 32
      %589 = vsyncadd [#allocation4], %s588
      %s590 = sshll.u32 [#allocation5], 4
      %s591 = int_to_ptr.vmem [resolvable:$true] %s590
      %596 = dma.vmem_to_hbm [thread:$0]  %s591, 32, %s3, [#allocation4], 16, 16, 1
    $region21: #{tpu_custom_call.1} parent=1 // pred_fallthru
      _
    // Predicated region
    $region22: #{tpu_custom_call.1} parent=1 // pred_check
      _
    $region23: #{tpu_custom_call.1} parent=1 // pred_check_branch
      %598 = sbr.rel (0) target = $region25
    $region24: #{tpu_custom_call.1} parent=1 // pred_region
      %599 = dma.done [#allocation4], 32
    $region25: #{tpu_custom_call.1} parent=1 // pred_fallthru
      _
    %600 = vsyncpa [#allocation3], 1
    %601 = vsyncpa [#allocation4], 1

</llo_original>
